<compile_context>
chip_gen: v6e
topology: v6e:2x2x1
jax: 0.10.0
libtpu: 0.0.40
codegen_flags: <defaults>
</compile_context>

<pallas_src>
import jax
import jax.numpy as jnp
from jax.experimental import pallas as pl
from jax.experimental.pallas import tpu as pltpu


def _shading_loss_kernel(kx_ref, ky_ref, img_ref, objx_ref, objy_ref, mask_ref,
                         out_ref, carry_ref, accx_ref, accy_ref):
    # Block shapes (static):
    #   img_ref  : (1, Ci, TH, W)
    #   objx_ref : (1, Co, TH, W)   horizontal objective, zero-padded column W-1
    #   objy_ref : (1, Co, TH, W)   vertical objective, zero-padded row H-1
    #   mask_ref : (1, 1,  TH, W)
    #   out_ref  : (1, 1, 128)      lane0 = sum_x, lane1 = sum_y (per batch element)
    # Scratch:
    #   carry_ref: (Ci, 1, W) VMEM  top image row of the previously visited tile
    #                                (i.e. the tile directly BELOW; grid walks bottom-up)
    #   accx_ref, accy_ref: (8, W) f32 VMEM running |diff| sums, reduced in epilogue
    tp = pl.program_id(1)
    num_t = pl.num_programs(1)
    _, Ci, TH, W = img_ref.shape
    Co = objx_ref.shape[1]
    num_strips = TH // 8
    t = num_t - 1 - tp                       # actual H-tile index (bottom-up walk)
    H = num_t * TH

    @pl.when(tp == 0)
    def _init():
        accx_ref[...] = jnp.zeros_like(accx_ref)
        accy_ref[...] = jnp.zeros_like(accy_ref)

    # Image row directly below this tile (saved by the previous grid step). On the
    # bottom tile it is garbage, but that row's vertical-conv output is y-invalid and
    # is removed with a select (never a multiply), so garbage cannot leak NaN/Inf.
    below_tile = carry_ref[...]              # (Ci, 1, W)
    carry_ref[...] = img_ref[0, :, 0:1, :]   # this tile's top row -> next grid step

    # Hoisted loop invariants (SMEM scalar reads + iotas out of the strip loop).
    kx = [kx_ref[i] for i in range(Co * Ci * 2)]
    ky = [ky_ref[i] for i in range(Co * Ci * 2)]
    lane = jax.lax.broadcasted_iota(jnp.int32, (8, W), 1)
    row_local = jax.lax.broadcasted_iota(jnp.int32, (8, W), 0)
    col_valid = (lane < W - 1).astype(jnp.float32)   # conv_x output exists for w < W-1

    def strip_body(s, below_rows):
        # Strips are visited bottom-to-top so each strip's top row becomes the
        # "row below" carry of the next one; below_rows is a Ci-tuple of (1, W).
        st = num_strips - 1 - s
        r0 = pl.multiple_of(st * 8, 8)

        a, ax1, ay1 = [], [], []
        for ci in range(Ci):
            v = img_ref[0, ci, pl.ds(r0, 8), :]                   # (8, W)
            a.append(v)
            # img[h, w+1]: lane rotate on the XLU; wrapped column W-1 is masked later.
            ax1.append(pltpu.roll(v, W - 1, 1))
            # img[h+1, w]: sublane rotate, then inject the true row below into row 7.
            rolled = pltpu.roll(v, 7, 0)
            ay1.append(jnp.where(row_local == 7, below_rows[ci], rolled))

        dx = jnp.zeros((8, W), jnp.float32)
        dy = jnp.zeros((8, W), jnp.float32)
        for co in range(Co):
            accx = jnp.zeros((8, W), jnp.float32)
            accy = jnp.zeros((8, W), jnp.float32)
            for ci in range(Ci):
                base = (co * Ci + ci) * 2
                accx = accx + a[ci] * kx[base] + ax1[ci] * kx[base + 1]
                accy = accy + a[ci] * ky[base] + ay1[ci] * ky[base + 1]
            dx = dx + jnp.abs(accx - objx_ref[0, co, pl.ds(r0, 8), :])
            dy = dy + jnp.abs(accy - objy_ref[0, co, pl.ds(r0, 8), :])

        # Mask applied once per strip (not per co); the mask is binary/non-negative so
        # it factors out of |.|.  col_valid kills the wrapped last column of accx; the
        # y-invalid last image row uses a select (not *) so garbage in the bottom-tile
        # carry or in the zero-padded objective row can never leak.
        m = mask_ref[0, 0, pl.ds(r0, 8), :]
        row_g = t * TH + r0 + row_local
        y_valid = row_g < H - 1
        accx_ref[...] = accx_ref[...] + dx * (m * col_valid)
        accy_ref[...] = accy_ref[...] + jnp.where(y_valid, dy, 0.0) * m

        # This strip's top row is the "row below" of the strip above.
        return tuple(a[ci][0:1, :] for ci in range(Ci))

    init_below = tuple(below_tile[ci] for ci in range(Ci))
    jax.lax.fori_loop(0, num_strips, strip_body, init_below, unroll=True)

    @pl.when(tp == num_t - 1)
    def _emit():
        sx = jnp.sum(accx_ref[...])
        sy = jnp.sum(accy_ref[...])
        lane1 = jax.lax.broadcasted_iota(jnp.int32, (1, 128), 1)
        out_ref[0] = jnp.where(lane1 == 0, sx, 0.0) + jnp.where(lane1 == 1, sy, 0.0)


def _vmem_capacity_bytes(default_bytes=64 * 1024 * 1024):
    try:
        cap = getattr(pltpu.get_tpu_info(), "vmem_capacity_bytes", None)
        if cap:
            return int(cap)
    except Exception:
        pass
    return default_bytes


def _pick_block_h(H, W, Ci, Co, budget_bytes):
    """Largest multiple-of-8 divisor of H whose double-buffered working set fits."""
    # img(Ci) + objx(Co) + objy(Co) + mask(1) rows, f32, each stream double-buffered.
    per_row_bytes = 4 * W * (Ci + 2 * Co + 1)
    best = 8
    for th in range(8, H + 1, 8):
        if H % th == 0 and 2 * th * per_row_bytes <= budget_bytes:
            best = th
    return best


def my_model_forward(img, objective_ix_t, objective_iy_t, ikernel_x, ikernel_y,
                     mask_tensor, *, block_h=None):
    """JAX/Pallas equivalent of MyModel.forward (img == the nn.Parameter)."""
    img = img.astype(jnp.float32)
    objx = objective_ix_t.astype(jnp.float32)
    objy = objective_iy_t.astype(jnp.float32)
    mask = mask_tensor.astype(jnp.float32)
    kx_flat = ikernel_x.astype(jnp.float32).reshape(-1)   # (Co*Ci*2,), order co,ci,kw
    ky_flat = ikernel_y.astype(jnp.float32).reshape(-1)   # (Co*Ci*2,), order co,ci,kh

    N, Ci, H, W = img.shape
    Co = ikernel_x.shape[0]
    assert ikernel_x.shape == (Co, Ci, 1, 2)
    assert ikernel_y.shape == (Co, Ci, 2, 1)
    assert objx.shape == (N, Co, H, W - 1)
    assert objy.shape == (N, Co, H - 1, W)
    assert mask.shape == (1, 1, H, W), "kernel assumes a (1, 1, H, W) mask"
    assert H % 8 == 0  # TODO(synk): single-tile fallback path for H not divisible by 8

    # Lane/sublane-dense objectives: one zero column / zero row so every tiled
    # BlockSpec minor dim is full-extent (unmasked DMA + full vregs). The padding is
    # killed in-kernel by col_valid / y_valid.
    objx_p = jnp.pad(objx, ((0, 0), (0, 0), (0, 0), (0, 1)))   # (N, Co, H, W)
    objy_p = jnp.pad(objy, ((0, 0), (0, 0), (0, 1), (0, 0)))   # (N, Co, H, W)

    vmem_cap = _vmem_capacity_bytes()               # 128 MiB v5e/v6e, 64 MiB v7x
    vmem_limit = int(min(vmem_cap // 2, 64 * 1024 * 1024))
    if block_h is None:
        block_h = _pick_block_h(H, W, Ci, Co, budget_bytes=int(vmem_limit * 0.6))
    assert H % block_h == 0 and block_h % 8 == 0
    num_t = H // block_h

    # H-tiles are visited bottom-to-top so the carried top row of the previous tile is
    # exactly the "row below" needed by the vertical conv (no halo re-read from HBM).
    rev = lambda tp: num_t - 1 - tp
    in_specs = [
        pl.BlockSpec(memory_space=pltpu.MemorySpace.SMEM),                    # kx taps
        pl.BlockSpec(memory_space=pltpu.MemorySpace.SMEM),                    # ky taps
        pl.BlockSpec((1, Ci, block_h, W), lambda n, tp: (n, 0, rev(tp), 0)),  # img
        pl.BlockSpec((1, Co, block_h, W), lambda n, tp: (n, 0, rev(tp), 0)),  # objx (padded)
        pl.BlockSpec((1, Co, block_h, W), lambda n, tp: (n, 0, rev(tp), 0)),  # objy (padded)
        pl.BlockSpec((1, 1, block_h, W), lambda n, tp: (0, 0, rev(tp), 0)),   # mask
    ]
    out_spec = pl.BlockSpec((1, 1, 128), lambda n, tp: (n, 0, 0))

    cost = pl.CostEstimate(
        flops=int(8 * N * Co * Ci * H * W),
        transcendentals=0,
        bytes_accessed=int(4 * (N * Ci * H * W + 2 * N * Co * H * W + H * W)),
    )

    # TODO(synk): on v7x with N < 2, add a CORE_PARALLEL split of the H-tile axis so
    # both TensorCores get work (batch axis alone covers it only when N >= 2).
    # TODO(synk): if an xprof trace on v7x shows exposed DMA at tile boundaries, add
    # pipeline_mode=pl.Buffered(3) to the img/objx/objy BlockSpecs.
    partials = pl.pallas_call(
        _shading_loss_kernel,
        grid=(N, num_t),
        in_specs=in_specs,
        out_specs=out_spec,
        out_shape=jax.ShapeDtypeStruct((N, 1, 128), jnp.float32),
        scratch_shapes=[pltpu.VMEM((Ci, 1, W), jnp.float32),   # inter-tile row carry
                        pltpu.VMEM((8, W), jnp.float32),       # |dx| accumulator
                        pltpu.VMEM((8, W), jnp.float32)],      # |dy| accumulator
        compiler_params=pltpu.CompilerParams(
            dimension_semantics=("parallel", "arbitrary"),
            vmem_limit_bytes=vmem_limit,
        ),
        cost_estimate=cost,
    )(kx_flat, ky_flat, img, objx_p, objy_p, mask)

    sum_x = jnp.sum(partials[:, 0, 0])
    sum_y = jnp.sum(partials[:, 0, 1])
    loss = (sum_x / float(N * Co * H * (W - 1))
            + sum_y / float(N * Co * (H - 1) * W))
    return loss


def ref_forward(img, obj_x, obj_y, kx, ky, mask):
    """Pure-JAX reference mirroring the PyTorch module."""
    dn = ("NCHW", "OIHW", "NCHW")
    ix = jax.lax.conv_general_dilated(img, kx, (1, 1), "VALID", dimension_numbers=dn)
    iy = jax.lax.conv_general_dilated(img, ky, (1, 1), "VALID", dimension_numbers=dn)
    ix = ix * mask[:, :, :, :-1]
    iy = iy * mask[:, :, :-1, :]
    ox = obj_x * mask[:, :, :, :-1]
    oy = obj_y * mask[:, :, :-1, :]
    return jnp.mean(jnp.abs(ix - ox)) + jnp.mean(jnp.abs(iy - oy))


if __name__ == "__main__":
    key = jax.random.PRNGKey(0)
    k_img, k_ox, k_oy, k_kx, k_ky, k_m = jax.random.split(key, 6)

    # Small but lane-friendly shapes (W = 128 fills the TPU lane dimension).
    N, Ci, Co, H, W = 2, 3, 2, 32, 128
    img = jax.random.normal(k_img, (N, Ci, H, W), dtype=jnp.float32)       # nn.Parameter
    objective_ix_t = jax.random.normal(k_ox, (N, Co, H, W - 1), dtype=jnp.float32)
    objective_iy_t = jax.random.normal(k_oy, (N, Co, H - 1, W), dtype=jnp.float32)
    ikernel_x = jax.random.normal(k_kx, (Co, Ci, 1, 2), dtype=jnp.float32)
    ikernel_y = jax.random.normal(k_ky, (Co, Ci, 2, 1), dtype=jnp.float32)
    mask_tensor = (jax.random.uniform(k_m, (1, 1, H, W)) > 0.3).astype(jnp.float32)

    loss_ref = jax.block_until_ready(
        ref_forward(img, objective_ix_t, objective_iy_t, ikernel_x, ikernel_y,
                    mask_tensor))

    # block_h=8: 4 H-tiles (exercises the inter-tile carry chain);
    # block_h=16: 2 tiles x 2 strips (carry + strip loop); None: one big tile.
    for bh in (8, 16, None):
        loss = my_model_forward(img, objective_ix_t, objective_iy_t,
                                ikernel_x, ikernel_y, mask_tensor, block_h=bh)
        loss = jax.block_until_ready(loss)
        assert jnp.allclose(loss, loss_ref, rtol=1e-4, atol=1e-5), (bh, loss, loss_ref)

    print("KERNEL_OK")
</pallas_src>

<mosaic_0001>
module attributes {stable_mosaic.version = 11 : i64} {
  func.func @_shading_loss_kernel(%arg0: i32, %arg1: i32, %arg2: memref<12xf32, #tpu.memory_space<smem>>, %arg3: memref<12xf32, #tpu.memory_space<smem>>, %arg4: memref<1x3x8x128xf32, #tpu.memory_space<vmem>>, %arg5: memref<1x2x8x128xf32, #tpu.memory_space<vmem>>, %arg6: memref<1x2x8x128xf32, #tpu.memory_space<vmem>>, %arg7: memref<1x1x8x128xf32, #tpu.memory_space<vmem>>, %arg8: memref<1x1x128xf32, #tpu.memory_space<vmem>>, %arg9: memref<3x1x128xf32, #tpu.memory_space<vmem>>, %arg10: memref<8x128xf32, #tpu.memory_space<vmem>>, %arg11: memref<8x128xf32, #tpu.memory_space<vmem>>) attributes {dimension_semantics = [#tpu.dimension_semantics<parallel>, #tpu.dimension_semantics<arbitrary>], iteration_bounds = array<i64: 2, 4>, scalar_prefetch = 0 : i64, scratch_operands = 3 : i64, tpu.core_type = #tpu.core_type<tc>, window_params = [{transform_indices = @transform_0, window_bounds = array<i64: 12>}, {transform_indices = @transform_1, window_bounds = array<i64: 12>}, {transform_indices = @transform_2, window_bounds = array<i64: 1, 3, 8, 128>}, {transform_indices = @transform_3, window_bounds = array<i64: 1, 2, 8, 128>}, {transform_indices = @transform_4, window_bounds = array<i64: 1, 2, 8, 128>}, {transform_indices = @transform_5, window_bounds = array<i64: 1, 1, 8, 128>}, {transform_indices = @transform_6, window_bounds = array<i64: 1, 1, 128>}]} {
    %c3_i32 = arith.constant 3 : i32
    %0 = arith.subi %c3_i32, %arg1 : i32
    %c0_i32 = arith.constant 0 : i32
    %1 = arith.cmpi eq, %arg1, %c0_i32 : i32
    %2 = arith.extui %1 : i1 to i32
    %c0_i32_0 = arith.constant 0 : i32
    %3 = arith.cmpi ne, %2, %c0_i32_0 : i32
    scf.if %3 {
      %cst_74 = arith.constant 0.000000e+00 : f32
      %205 = vector.broadcast %cst_74 : f32 to vector<8x128xf32>
      %c0_75 = arith.constant 0 : index
      %c0_76 = arith.constant 0 : index
      %206 = vector.load %arg10[%c0_75, %c0_76] : memref<8x128xf32, #tpu.memory_space<vmem>>, vector<8x128xf32>
      tpu.vector_store %arg10[%c0_75, %c0_76], %205 {strides = array<i32>} : memref<8x128xf32, #tpu.memory_space<vmem>>, vector<8x128xf32>,
      %cst_77 = arith.constant 0.000000e+00 : f32
      %207 = vector.broadcast %cst_77 : f32 to vector<8x128xf32>
      %c0_78 = arith.constant 0 : index
      %c0_79 = arith.constant 0 : index
      %208 = vector.load %arg11[%c0_78, %c0_79] : memref<8x128xf32, #tpu.memory_space<vmem>>, vector<8x128xf32>
      tpu.vector_store %arg11[%c0_78, %c0_79], %207 {strides = array<i32>} : memref<8x128xf32, #tpu.memory_space<vmem>>, vector<8x128xf32>,
    } else {
    }
    %c0 = arith.constant 0 : index
    %c0_1 = arith.constant 0 : index
    %c0_2 = arith.constant 0 : index
    %4 = vector.load %arg9[%c0, %c0_1, %c0_2] : memref<3x1x128xf32, #tpu.memory_space<vmem>>, vector<3x1x128xf32>
    %c0_3 = arith.constant 0 : index
    %c0_4 = arith.constant 0 : index
    %c0_5 = arith.constant 0 : index
    %c0_6 = arith.constant 0 : index
    %5 = vector.load %arg4[%c0_3, %c0_4, %c0_5, %c0_6] : memref<1x3x8x128xf32, #tpu.memory_space<vmem>>, vector<1x3x1x128xf32>
    %6 = vector.shape_cast %5 : vector<1x3x1x128xf32> to vector<3x1x128xf32>
    %c0_7 = arith.constant 0 : index
    %c0_8 = arith.constant 0 : index
    %c0_9 = arith.constant 0 : index
    %7 = vector.load %arg9[%c0_7, %c0_8, %c0_9] : memref<3x1x128xf32, #tpu.memory_space<vmem>>, vector<3x1x128xf32>
    tpu.vector_store %arg9[%c0_7, %c0_8, %c0_9], %6 {strides = array<i32>} : memref<3x1x128xf32, #tpu.memory_space<vmem>>, vector<3x1x128xf32>,
    %c0_10 = arith.constant 0 : index
    %8 = memref.load %arg2[%c0_10] : memref<12xf32, #tpu.memory_space<smem>>
    %c1 = arith.constant 1 : index
    %9 = memref.load %arg2[%c1] : memref<12xf32, #tpu.memory_space<smem>>
    %c2 = arith.constant 2 : index
    %10 = memref.load %arg2[%c2] : memref<12xf32, #tpu.memory_space<smem>>
    %c3 = arith.constant 3 : index
    %11 = memref.load %arg2[%c3] : memref<12xf32, #tpu.memory_space<smem>>
    %c4 = arith.constant 4 : index
    %12 = memref.load %arg2[%c4] : memref<12xf32, #tpu.memory_space<smem>>
    %c5 = arith.constant 5 : index
    %13 = memref.load %arg2[%c5] : memref<12xf32, #tpu.memory_space<smem>>
    %c6 = arith.constant 6 : index
    %14 = memref.load %arg2[%c6] : memref<12xf32, #tpu.memory_space<smem>>
    %c7 = arith.constant 7 : index
    %15 = memref.load %arg2[%c7] : memref<12xf32, #tpu.memory_space<smem>>
    %c8 = arith.constant 8 : index
    %16 = memref.load %arg2[%c8] : memref<12xf32, #tpu.memory_space<smem>>
    %c9 = arith.constant 9 : index
    %17 = memref.load %arg2[%c9] : memref<12xf32, #tpu.memory_space<smem>>
    %c10 = arith.constant 10 : index
    %18 = memref.load %arg2[%c10] : memref<12xf32, #tpu.memory_space<smem>>
    %c11 = arith.constant 11 : index
    %19 = memref.load %arg2[%c11] : memref<12xf32, #tpu.memory_space<smem>>
    %c0_11 = arith.constant 0 : index
    %20 = memref.load %arg3[%c0_11] : memref<12xf32, #tpu.memory_space<smem>>
    %c1_12 = arith.constant 1 : index
    %21 = memref.load %arg3[%c1_12] : memref<12xf32, #tpu.memory_space<smem>>
    %c2_13 = arith.constant 2 : index
    %22 = memref.load %arg3[%c2_13] : memref<12xf32, #tpu.memory_space<smem>>
    %c3_14 = arith.constant 3 : index
    %23 = memref.load %arg3[%c3_14] : memref<12xf32, #tpu.memory_space<smem>>
    %c4_15 = arith.constant 4 : index
    %24 = memref.load %arg3[%c4_15] : memref<12xf32, #tpu.memory_space<smem>>
    %c5_16 = arith.constant 5 : index
    %25 = memref.load %arg3[%c5_16] : memref<12xf32, #tpu.memory_space<smem>>
    %c6_17 = arith.constant 6 : index
    %26 = memref.load %arg3[%c6_17] : memref<12xf32, #tpu.memory_space<smem>>
    %c7_18 = arith.constant 7 : index
    %27 = memref.load %arg3[%c7_18] : memref<12xf32, #tpu.memory_space<smem>>
    %c8_19 = arith.constant 8 : index
    %28 = memref.load %arg3[%c8_19] : memref<12xf32, #tpu.memory_space<smem>>
    %c9_20 = arith.constant 9 : index
    %29 = memref.load %arg3[%c9_20] : memref<12xf32, #tpu.memory_space<smem>>
    %c10_21 = arith.constant 10 : index
    %30 = memref.load %arg3[%c10_21] : memref<12xf32, #tpu.memory_space<smem>>
    %c11_22 = arith.constant 11 : index
    %31 = memref.load %arg3[%c11_22] : memref<12xf32, #tpu.memory_space<smem>>
    %32 = tpu.iota {dimensions = array<i32: 1>} : vector<8x128xi32>
    %33 = tpu.iota {dimensions = array<i32: 0>} : vector<8x128xi32>
    %c127_i32 = arith.constant 127 : i32
    %34 = vector.broadcast %c127_i32 : i32 to vector<8x128xi32>
    %35 = arith.cmpi slt, %32, %34 : vector<8x128xi32>
    %36 = arith.extui %35 : vector<8x128xi1> to vector<8x128xi32>
    %37 = arith.sitofp %36 : vector<8x128xi32> to vector<8x128xf32>
    %38 = vector.extract_strided_slice %4 {offsets = [0, 0, 0], sizes = [1, 1, 128], strides = [1, 1, 1]} : vector<3x1x128xf32> to vector<1x1x128xf32>
    %39 = vector.shape_cast %38 : vector<1x1x128xf32> to vector<1x128xf32>
    %40 = vector.extract_strided_slice %4 {offsets = [1, 0, 0], sizes = [1, 1, 128], strides = [1, 1, 1]} : vector<3x1x128xf32> to vector<1x1x128xf32>
    %41 = vector.shape_cast %40 : vector<1x1x128xf32> to vector<1x128xf32>
    %42 = vector.extract_strided_slice %4 {offsets = [2, 0, 0], sizes = [1, 1, 128], strides = [1, 1, 1]} : vector<3x1x128xf32> to vector<1x1x128xf32>
    %43 = vector.shape_cast %42 : vector<1x1x128xf32> to vector<1x128xf32>
    %c0_i32_23 = arith.constant 0 : i32
    %c0_i32_24 = arith.constant 0 : i32
    %44 = arith.subi %c0_i32_24, %c0_i32_23 : i32
    %c8_i32 = arith.constant 8 : i32
    %45 = arith.muli %44, %c8_i32 : i32
    %46 = tpu.assume_multiple %45, 8 : i32
    %c0_25 = arith.constant 0 : index
    %c0_26 = arith.constant 0 : index
    %47 = arith.index_cast %46 : i32 to index
    %c0_27 = arith.constant 0 : index
    %48 = vector.load %arg4[%c0_25, %c0_26, %47, %c0_27] : memref<1x3x8x128xf32, #tpu.memory_space<vmem>>, vector<1x1x8x128xf32>
    %49 = vector.shape_cast %48 : vector<1x1x8x128xf32> to vector<8x128xf32>
    %c127_i32_28 = arith.constant 127 : i32
    %50 = tpu.dynamic_rotate %49 by %c127_i32_28 dim 1 : vector<8x128xf32>, i32 -> vector<8x128xf32>
    %c7_i32 = arith.constant 7 : i32
    %51 = tpu.dynamic_rotate %49 by %c7_i32 dim 0 : vector<8x128xf32>, i32 -> vector<8x128xf32>
    %c7_i32_29 = arith.constant 7 : i32
    %52 = vector.broadcast %c7_i32_29 : i32 to vector<8x128xi32>
    %53 = arith.cmpi eq, %33, %52 : vector<8x128xi32>
    %54 = vector.shape_cast %39 : vector<1x128xf32> to vector<1x128xf32>
    %55 = vector.broadcast %54 : vector<1x128xf32> to vector<8x128xf32>
    %56 = arith.select %53, %55, %51 : vector<8x128xi1>, vector<8x128xf32>
    %c0_30 = arith.constant 0 : index
    %c1_31 = arith.constant 1 : index
    %57 = arith.index_cast %46 : i32 to index
    %c0_32 = arith.constant 0 : index
    %58 = vector.load %arg4[%c0_30, %c1_31, %57, %c0_32] : memref<1x3x8x128xf32, #tpu.memory_space<vmem>>, vector<1x1x8x128xf32>
    %59 = vector.shape_cast %58 : vector<1x1x8x128xf32> to vector<8x128xf32>
    %c127_i32_33 = arith.constant 127 : i32
    %60 = tpu.dynamic_rotate %59 by %c127_i32_33 dim 1 : vector<8x128xf32>, i32 -> vector<8x128xf32>
    %c7_i32_34 = arith.constant 7 : i32
    %61 = tpu.dynamic_rotate %59 by %c7_i32_34 dim 0 : vector<8x128xf32>, i32 -> vector<8x128xf32>
    %c7_i32_35 = arith.constant 7 : i32
    %62 = vector.broadcast %c7_i32_35 : i32 to vector<8x128xi32>
    %63 = arith.cmpi eq, %33, %62 : vector<8x128xi32>
    %64 = vector.shape_cast %41 : vector<1x128xf32> to vector<1x128xf32>
    %65 = vector.broadcast %64 : vector<1x128xf32> to vector<8x128xf32>
    %66 = arith.select %63, %65, %61 : vector<8x128xi1>, vector<8x128xf32>
    %c0_36 = arith.constant 0 : index
    %c2_37 = arith.constant 2 : index
    %67 = arith.index_cast %46 : i32 to index
    %c0_38 = arith.constant 0 : index
    %68 = vector.load %arg4[%c0_36, %c2_37, %67, %c0_38] : memref<1x3x8x128xf32, #tpu.memory_space<vmem>>, vector<1x1x8x128xf32>
    %69 = vector.shape_cast %68 : vector<1x1x8x128xf32> to vector<8x128xf32>
    %c127_i32_39 = arith.constant 127 : i32
    %70 = tpu.dynamic_rotate %69 by %c127_i32_39 dim 1 : vector<8x128xf32>, i32 -> vector<8x128xf32>
    %c7_i32_40 = arith.constant 7 : i32
    %71 = tpu.dynamic_rotate %69 by %c7_i32_40 dim 0 : vector<8x128xf32>, i32 -> vector<8x128xf32>
    %c7_i32_41 = arith.constant 7 : i32
    %72 = vector.broadcast %c7_i32_41 : i32 to vector<8x128xi32>
    %73 = arith.cmpi eq, %33, %72 : vector<8x128xi32>
    %74 = vector.shape_cast %43 : vector<1x128xf32> to vector<1x128xf32>
    %75 = vector.broadcast %74 : vector<1x128xf32> to vector<8x128xf32>
    %76 = arith.select %73, %75, %71 : vector<8x128xi1>, vector<8x128xf32>
    %cst = arith.constant 0.000000e+00 : f32
    %77 = vector.broadcast %cst : f32 to vector<8x128xf32>
    %cst_42 = arith.constant 0.000000e+00 : f32
    %78 = vector.broadcast %cst_42 : f32 to vector<8x128xf32>
    %cst_43 = arith.constant 0.000000e+00 : f32
    %79 = vector.broadcast %cst_43 : f32 to vector<8x128xf32>
    %cst_44 = arith.constant 0.000000e+00 : f32
    %80 = vector.broadcast %cst_44 : f32 to vector<8x128xf32>
    %81 = vector.broadcast %8 : f32 to vector<8x128xf32>
    %82 = arith.mulf %49, %81 : vector<8x128xf32>
    %83 = arith.addf %79, %82 : vector<8x128xf32>
    %84 = vector.broadcast %9 : f32 to vector<8x128xf32>
    %85 = arith.mulf %50, %84 : vector<8x128xf32>
    %86 = arith.addf %83, %85 : vector<8x128xf32>
    %87 = vector.broadcast %20 : f32 to vector<8x128xf32>
    %88 = arith.mulf %49, %87 : vector<8x128xf32>
    %89 = arith.addf %80, %88 : vector<8x128xf32>
    %90 = vector.broadcast %21 : f32 to vector<8x128xf32>
    %91 = arith.mulf %56, %90 : vector<8x128xf32>
    %92 = arith.addf %89, %91 : vector<8x128xf32>
    %93 = vector.broadcast %10 : f32 to vector<8x128xf32>
    %94 = arith.mulf %59, %93 : vector<8x128xf32>
    %95 = arith.addf %86, %94 : vector<8x128xf32>
    %96 = vector.broadcast %11 : f32 to vector<8x128xf32>
    %97 = arith.mulf %60, %96 : vector<8x128xf32>
    %98 = arith.addf %95, %97 : vector<8x128xf32>
    %99 = vector.broadcast %22 : f32 to vector<8x128xf32>
    %100 = arith.mulf %59, %99 : vector<8x128xf32>
    %101 = arith.addf %92, %100 : vector<8x128xf32>
    %102 = vector.broadcast %23 : f32 to vector<8x128xf32>
    %103 = arith.mulf %66, %102 : vector<8x128xf32>
    %104 = arith.addf %101, %103 : vector<8x128xf32>
    %105 = vector.broadcast %12 : f32 to vector<8x128xf32>
    %106 = arith.mulf %69, %105 : vector<8x128xf32>
    %107 = arith.addf %98, %106 : vector<8x128xf32>
    %108 = vector.broadcast %13 : f32 to vector<8x128xf32>
    %109 = arith.mulf %70, %108 : vector<8x128xf32>
    %110 = arith.addf %107, %109 : vector<8x128xf32>
    %111 = vector.broadcast %24 : f32 to vector<8x128xf32>
    %112 = arith.mulf %69, %111 : vector<8x128xf32>
    %113 = arith.addf %104, %112 : vector<8x128xf32>
    %114 = vector.broadcast %25 : f32 to vector<8x128xf32>
    %115 = arith.mulf %76, %114 : vector<8x128xf32>
    %116 = arith.addf %113, %115 : vector<8x128xf32>
    %c0_45 = arith.constant 0 : index
    %c0_46 = arith.constant 0 : index
    %117 = arith.index_cast %46 : i32 to index
    %c0_47 = arith.constant 0 : index
    %118 = vector.load %arg5[%c0_45, %c0_46, %117, %c0_47] : memref<1x2x8x128xf32, #tpu.memory_space<vmem>>, vector<1x1x8x128xf32>
    %119 = vector.shape_cast %118 : vector<1x1x8x128xf32> to vector<8x128xf32>
    %120 = arith.subf %110, %119 : vector<8x128xf32>
    %121 = math.absf %120 : vector<8x128xf32>
    %122 = arith.addf %77, %121 : vector<8x128xf32>
    %c0_48 = arith.constant 0 : index
    %c0_49 = arith.constant 0 : index
    %123 = arith.index_cast %46 : i32 to index
    %c0_50 = arith.constant 0 : index
    %124 = vector.load %arg6[%c0_48, %c0_49, %123, %c0_50] : memref<1x2x8x128xf32, #tpu.memory_space<vmem>>, vector<1x1x8x128xf32>
    %125 = vector.shape_cast %124 : vector<1x1x8x128xf32> to vector<8x128xf32>
    %126 = arith.subf %116, %125 : vector<8x128xf32>
    %127 = math.absf %126 : vector<8x128xf32>
    %128 = arith.addf %78, %127 : vector<8x128xf32>
    %cst_51 = arith.constant 0.000000e+00 : f32
    %129 = vector.broadcast %cst_51 : f32 to vector<8x128xf32>
    %cst_52 = arith.constant 0.000000e+00 : f32
    %130 = vector.broadcast %cst_52 : f32 to vector<8x128xf32>
    %131 = vector.broadcast %14 : f32 to vector<8x128xf32>
    %132 = arith.mulf %49, %131 : vector<8x128xf32>
    %133 = arith.addf %129, %132 : vector<8x128xf32>
    %134 = vector.broadcast %15 : f32 to vector<8x128xf32>
    %135 = arith.mulf %50, %134 : vector<8x128xf32>
    %136 = arith.addf %133, %135 : vector<8x128xf32>
    %137 = vector.broadcast %26 : f32 to vector<8x128xf32>
    %138 = arith.mulf %49, %137 : vector<8x128xf32>
    %139 = arith.addf %130, %138 : vector<8x128xf32>
    %140 = vector.broadcast %27 : f32 to vector<8x128xf32>
    %141 = arith.mulf %56, %140 : vector<8x128xf32>
    %142 = arith.addf %139, %141 : vector<8x128xf32>
    %143 = vector.broadcast %16 : f32 to vector<8x128xf32>
    %144 = arith.mulf %59, %143 : vector<8x128xf32>
    %145 = arith.addf %136, %144 : vector<8x128xf32>
    %146 = vector.broadcast %17 : f32 to vector<8x128xf32>
    %147 = arith.mulf %60, %146 : vector<8x128xf32>
    %148 = arith.addf %145, %147 : vector<8x128xf32>
    %149 = vector.broadcast %28 : f32 to vector<8x128xf32>
    %150 = arith.mulf %59, %149 : vector<8x128xf32>
    %151 = arith.addf %142, %150 : vector<8x128xf32>
    %152 = vector.broadcast %29 : f32 to vector<8x128xf32>
    %153 = arith.mulf %66, %152 : vector<8x128xf32>
    %154 = arith.addf %151, %153 : vector<8x128xf32>
    %155 = vector.broadcast %18 : f32 to vector<8x128xf32>
    %156 = arith.mulf %69, %155 : vector<8x128xf32>
    %157 = arith.addf %148, %156 : vector<8x128xf32>
    %158 = vector.broadcast %19 : f32 to vector<8x128xf32>
    %159 = arith.mulf %70, %158 : vector<8x128xf32>
    %160 = arith.addf %157, %159 : vector<8x128xf32>
    %161 = vector.broadcast %30 : f32 to vector<8x128xf32>
    %162 = arith.mulf %69, %161 : vector<8x128xf32>
    %163 = arith.addf %154, %162 : vector<8x128xf32>
    %164 = vector.broadcast %31 : f32 to vector<8x128xf32>
    %165 = arith.mulf %76, %164 : vector<8x128xf32>
    %166 = arith.addf %163, %165 : vector<8x128xf32>
    %c0_53 = arith.constant 0 : index
    %c1_54 = arith.constant 1 : index
    %167 = arith.index_cast %46 : i32 to index
    %c0_55 = arith.constant 0 : index
    %168 = vector.load %arg5[%c0_53, %c1_54, %167, %c0_55] : memref<1x2x8x128xf32, #tpu.memory_space<vmem>>, vector<1x1x8x128xf32>
    %169 = vector.shape_cast %168 : vector<1x1x8x128xf32> to vector<8x128xf32>
    %170 = arith.subf %160, %169 : vector<8x128xf32>
    %171 = math.absf %170 : vector<8x128xf32>
    %172 = arith.addf %122, %171 : vector<8x128xf32>
    %c0_56 = arith.constant 0 : index
    %c1_57 = arith.constant 1 : index
    %173 = arith.index_cast %46 : i32 to index
    %c0_58 = arith.constant 0 : index
    %174 = vector.load %arg6[%c0_56, %c1_57, %173, %c0_58] : memref<1x2x8x128xf32, #tpu.memory_space<vmem>>, vector<1x1x8x128xf32>
    %175 = vector.shape_cast %174 : vector<1x1x8x128xf32> to vector<8x128xf32>
    %176 = arith.subf %166, %175 : vector<8x128xf32>
    %177 = math.absf %176 : vector<8x128xf32>
    %178 = arith.addf %128, %177 : vector<8x128xf32>
    %c0_59 = arith.constant 0 : index
    %c0_60 = arith.constant 0 : index
    %179 = arith.index_cast %46 : i32 to index
    %c0_61 = arith.constant 0 : index
    %180 = vector.load %arg7[%c0_59, %c0_60, %179, %c0_61] : memref<1x1x8x128xf32, #tpu.memory_space<vmem>>, vector<1x1x8x128xf32>
    %181 = vector.shape_cast %180 : vector<1x1x8x128xf32> to vector<8x128xf32>
    %c8_i32_62 = arith.constant 8 : i32
    %182 = arith.muli %0, %c8_i32_62 : i32
    %183 = arith.addi %182, %46 : i32
    %184 = vector.broadcast %183 : i32 to vector<8x128xi32>
    %185 = arith.addi %184, %33 : vector<8x128xi32>
    %c31_i32 = arith.constant 31 : i32
    %186 = vector.broadcast %c31_i32 : i32 to vector<8x128xi32>
    %187 = arith.cmpi slt, %185, %186 : vector<8x128xi32>
    %c0_63 = arith.constant 0 : index
    %c0_64 = arith.constant 0 : index
    %188 = vector.load %arg10[%c0_63, %c0_64] : memref<8x128xf32, #tpu.memory_space<vmem>>, vector<8x128xf32>
    %189 = arith.mulf %181, %37 : vector<8x128xf32>
    %190 = arith.mulf %172, %189 : vector<8x128xf32>
    %191 = arith.addf %188, %190 : vector<8x128xf32>
    %c0_65 = arith.constant 0 : index
    %c0_66 = arith.constant 0 : index
    %192 = vector.load %arg10[%c0_65, %c0_66] : memref<8x128xf32, #tpu.memory_space<vmem>>, vector<8x128xf32>
    tpu.vector_store %arg10[%c0_65, %c0_66], %191 {strides = array<i32>} : memref<8x128xf32, #tpu.memory_space<vmem>>, vector<8x128xf32>,
    %c0_67 = arith.constant 0 : index
    %c0_68 = arith.constant 0 : index
    %193 = vector.load %arg11[%c0_67, %c0_68] : memref<8x128xf32, #tpu.memory_space<vmem>>, vector<8x128xf32>
    %cst_69 = arith.constant 0.000000e+00 : f32
    %194 = vector.broadcast %cst_69 : f32 to vector<8x128xf32>
    %195 = arith.select %187, %178, %194 : vector<8x128xi1>, vector<8x128xf32>
    %196 = arith.mulf %195, %181 : vector<8x128xf32>
    %197 = arith.addf %193, %196 : vector<8x128xf32>
    %c0_70 = arith.constant 0 : index
    %c0_71 = arith.constant 0 : index
    %198 = vector.load %arg11[%c0_70, %c0_71] : memref<8x128xf32, #tpu.memory_space<vmem>>, vector<8x128xf32>
    tpu.vector_store %arg11[%c0_70, %c0_71], %197 {strides = array<i32>} : memref<8x128xf32, #tpu.memory_space<vmem>>, vector<8x128xf32>,
    %199 = vector.extract_strided_slice %49 {offsets = [0, 0], sizes = [1, 128], strides = [1, 1]} : vector<8x128xf32> to vector<1x128xf32>
    %200 = vector.extract_strided_slice %59 {offsets = [0, 0], sizes = [1, 128], strides = [1, 1]} : vector<8x128xf32> to vector<1x128xf32>
    %201 = vector.extract_strided_slice %69 {offsets = [0, 0], sizes = [1, 128], strides = [1, 1]} : vector<8x128xf32> to vector<1x128xf32>
    %c1_i32 = arith.constant 1 : i32
    %c3_i32_72 = arith.constant 3 : i32
    %202 = arith.cmpi eq, %arg1, %c3_i32_72 : i32
    %203 = arith.extui %202 : i1 to i32
    %c0_i32_73 = arith.constant 0 : i32
    %204 = arith.cmpi ne, %203, %c0_i32_73 : i32
    scf.if %204 {
      %c0_74 = arith.constant 0 : index
      %c0_75 = arith.constant 0 : index
      %205 = vector.load %arg10[%c0_74, %c0_75] : memref<8x128xf32, #tpu.memory_space<vmem>>, vector<8x128xf32>
      %206 = vector.shape_cast %205 : vector<8x128xf32> to vector<1x8x128xf32>
      %cst_76 = arith.constant dense<0.000000e+00> : vector<1xf32>
      %207 = vector.multi_reduction <add>, %206, %cst_76 [1, 2] : vector<1x8x128xf32> to vector<1xf32>
      %208 = vector.shape_cast %207 : vector<1xf32> to vector<1x1x1xf32>
      %209 = vector.extract %208[0, 0, 0] : f32 from vector<1x1x1xf32>
      %c0_77 = arith.constant 0 : index
      %c0_78 = arith.constant 0 : index
      %210 = vector.load %arg11[%c0_77, %c0_78] : memref<8x128xf32, #tpu.memory_space<vmem>>, vector<8x128xf32>
      %211 = vector.shape_cast %210 : vector<8x128xf32> to vector<1x8x128xf32>
      %cst_79 = arith.constant dense<0.000000e+00> : vector<1xf32>
      %212 = vector.multi_reduction <add>, %211, %cst_79 [1, 2] : vector<1x8x128xf32> to vector<1xf32>
      %213 = vector.shape_cast %212 : vector<1xf32> to vector<1x1x1xf32>
      %214 = vector.extract %213[0, 0, 0] : f32 from vector<1x1x1xf32>
      %215 = tpu.iota {dimensions = array<i32: 1>} : vector<1x128xi32>
      %c0_i32_80 = arith.constant 0 : i32
      %216 = vector.broadcast %c0_i32_80 : i32 to vector<1x128xi32>
      %217 = arith.cmpi eq, %215, %216 : vector<1x128xi32>
      %cst_81 = arith.constant 0.000000e+00 : f32
      %218 = vector.broadcast %209 : f32 to vector<1x128xf32>
      %219 = vector.broadcast %cst_81 : f32 to vector<1x128xf32>
      %220 = arith.select %217, %218, %219 : vector<1x128xi1>, vector<1x128xf32>
      %c1_i32_82 = arith.constant 1 : i32
      %221 = vector.broadcast %c1_i32_82 : i32 to vector<1x128xi32>
      %222 = arith.cmpi eq, %215, %221 : vector<1x128xi32>
      %cst_83 = arith.constant 0.000000e+00 : f32
      %223 = vector.broadcast %214 : f32 to vector<1x128xf32>
      %224 = vector.broadcast %cst_83 : f32 to vector<1x128xf32>
      %225 = arith.select %222, %223, %224 : vector<1x128xi1>, vector<1x128xf32>
      %226 = arith.addf %220, %225 : vector<1x128xf32>
      %c0_84 = arith.constant 0 : index
      %c0_85 = arith.constant 0 : index
      %c0_86 = arith.constant 0 : index
      %227 = vector.load %arg8[%c0_84, %c0_85, %c0_86] : memref<1x1x128xf32, #tpu.memory_space<vmem>>, vector<1x1x128xf32>
      %228 = vector.shape_cast %227 : vector<1x1x128xf32> to vector<1x128xf32>
      %229 = vector.shape_cast %226 : vector<1x128xf32> to vector<1x1x128xf32>
      tpu.vector_store %arg8[%c0_84, %c0_85, %c0_86], %229 {strides = array<i32>} : memref<1x1x128xf32, #tpu.memory_space<vmem>>, vector<1x1x128xf32>,
    } else {
    }
    return
  }
  func.func @transform_0(%arg0: i32, %arg1: i32) -> i32 {
    %c0_i32 = arith.constant 0 : i32
    %c0_i32_0 = arith.constant 0 : i32
    return %c0_i32 : i32
  }
  func.func @transform_1(%arg0: i32, %arg1: i32) -> i32 {
    %c0_i32 = arith.constant 0 : i32
    %c0_i32_0 = arith.constant 0 : i32
    return %c0_i32 : i32
  }
  func.func @transform_2(%arg0: i32, %arg1: i32) -> (i32, i32, i32, i32) {
    %c3_i32 = arith.constant 3 : i32
    %0 = arith.subi %c3_i32, %arg1 : i32
    %c0_i32 = arith.constant 0 : i32
    %c0_i32_0 = arith.constant 0 : i32
    %c0_i32_1 = arith.constant 0 : i32
    return %arg0, %c0_i32, %0, %c0_i32_0 : i32, i32, i32, i32
  }
  func.func @transform_3(%arg0: i32, %arg1: i32) -> (i32, i32, i32, i32) {
    %c3_i32 = arith.constant 3 : i32
    %0 = arith.subi %c3_i32, %arg1 : i32
    %c0_i32 = arith.constant 0 : i32
    %c0_i32_0 = arith.constant 0 : i32
    %c0_i32_1 = arith.constant 0 : i32
    return %arg0, %c0_i32, %0, %c0_i32_0 : i32, i32, i32, i32
  }
  func.func @transform_4(%arg0: i32, %arg1: i32) -> (i32, i32, i32, i32) {
    %c3_i32 = arith.constant 3 : i32
    %0 = arith.subi %c3_i32, %arg1 : i32
    %c0_i32 = arith.constant 0 : i32
    %c0_i32_0 = arith.constant 0 : i32
    %c0_i32_1 = arith.constant 0 : i32
    return %arg0, %c0_i32, %0, %c0_i32_0 : i32, i32, i32, i32
  }
  func.func @transform_5(%arg0: i32, %arg1: i32) -> (i32, i32, i32, i32) {
    %c3_i32 = arith.constant 3 : i32
    %0 = arith.subi %c3_i32, %arg1 : i32
    %c0_i32 = arith.constant 0 : i32
    %c0_i32_0 = arith.constant 0 : i32
    %c0_i32_1 = arith.constant 0 : i32
    %c0_i32_2 = arith.constant 0 : i32
    return %c0_i32, %c0_i32_0, %0, %c0_i32_1 : i32, i32, i32, i32
  }
  func.func @transform_6(%arg0: i32, %arg1: i32) -> (i32, i32, i32) {
    %c0_i32 = arith.constant 0 : i32
    %c0_i32_0 = arith.constant 0 : i32
    %c0_i32_1 = arith.constant 0 : i32
    return %arg0, %c0_i32, %c0_i32_0 : i32, i32, i32
  }
}

</mosaic_0001>

<llo_original>
// kernel: tpu_custom_call.1
$region0: #{tpu_custom_call.1}
  #allocation0 [shape = 'u32[]', space=smem, size = 0x4, offset = 0x4, fixed_abs, tag = 'smem constant byte address 0x4 - core index']
  #allocation1 [shape = 'u32[144,128]{1,0:T(1,128)}', space=vmem, size = 0x12000, scoped, tag = 'internal scratch']
  #allocation2 [shape = 'f32[3,1,128]{2,1,0:T(1,128)}', space=vmem, size = 0x600, scoped, tag = 'scratch operand']
  #allocation3 [shape = 'f32[8,128]{1,0:T(8,128)}', space=vmem, size = 0x1000, scoped, tag = 'scratch operand']
  #allocation4 [shape = 'f32[8,128]{1,0:T(8,128)}', space=vmem, size = 0x1000, scoped, tag = 'scratch operand']
  %s0 = inlined_call_operand.hbm [shape: f32[12], index: 0, kind: input, shape index: {}]
  %s1 = inlined_call_operand.vmem [shape: f32[12], index: 1, kind: input, shape index: {}]
  %s2 = inlined_call_operand.hbm [shape: f32[2,3,32,128], index: 2, kind: input, shape index: {}]
  %s3 = inlined_call_operand.hbm [shape: f32[2,2,32,128], index: 3, kind: input, shape index: {}]
  %s4 = inlined_call_operand.hbm [shape: f32[2,2,32,128], index: 4, kind: input, shape index: {}]
  %s5 = inlined_call_operand.hbm [shape: f32[1,1,32,128], index: 5, kind: input, shape index: {}]
  %s6 = inlined_call_operand.hbm [shape: f32[2,1,128], index: 6, kind: output, shape index: {}]
  %s7 = sld [smem:[#allocation0]]
  $region89: #{tpu_custom_call.1} parent=0
    _
  %s9 = ssub.s32 1, %s7
  %s10 = scalar_select 0, %s9, %s7
  $region1: #{tpu_custom_call.1} parent=0
    #allocation5 [shape = 'u8[512]{0}', space=smem, size = 0x200, scoped, tag = 'input window, operand 0, single buffered']
    #allocation6 [shape = 's32[2]{0}', space=sflag, size = 0x8, scoped, tag = 'scoped memory for tpu_custom_call.1']
    #allocation7 [shape = 's32[2]{0}', space=sflag, size = 0x8, scoped, tag = 'scoped memory for tpu_custom_call.1']
    #allocation8 [shape = 's32[2]{0}', space=sflag, size = 0x8, scoped, tag = 'scoped memory for tpu_custom_call.1']
    #allocation9 [shape = 's32[2]{0}', space=sflag, size = 0x8, scoped, tag = 'scoped memory for tpu_custom_call.1']
    #allocation10 [shape = 'u8[512]{0}', space=smem, size = 0x200, scoped, tag = 'input window, operand 1, single buffered']
    #allocation11 [shape = 'u8[24576]{0}', space=vmem, size = 0x6000, scoped, tag = 'input window, operand 2']
    #allocation12 [shape = 'u8[16384]{0}', space=vmem, size = 0x4000, scoped, tag = 'input window, operand 3']
    #allocation13 [shape = 's32[2]{0}', space=sflag, size = 0x8, scoped, tag = 'scoped memory for tpu_custom_call.1']
    #allocation14 [shape = 'u8[16384]{0}', space=vmem, size = 0x4000, scoped, tag = 'input window, operand 4']
    #allocation15 [shape = 'u8[8192]{0}', space=vmem, size = 0x2000, scoped, tag = 'input window, operand 5']
    #allocation16 [shape = 's32[2]{0}', space=sflag, size = 0x8, scoped, tag = 'scoped memory for tpu_custom_call.1']
    #allocation17 [shape = 'u8[1024]{0}', space=vmem, size = 0x400, scoped, tag = 'output window, operand 0']
    %11 = vsyncpa [#allocation8], 0
    %12 = vsyncpa [#allocation9], 0
    %13 = vsyncpa [#allocation6], 0
    %s14 = scalar_lea.sflag [#allocation6], 1
    %15 = vsyncpa %s14, 0
    %16 = vsyncpa [#allocation13], 0
    %s17 = scalar_lea.sflag [#allocation13], 1
    %18 = vsyncpa %s17, 0
    %19 = vsyncpa [#allocation16], 0
    %s20 = scalar_lea.sflag [#allocation16], 1
    %21 = vsyncpa %s20, 0
    %22 = vsyncpa [#allocation7], 0
    %s23 = scalar_lea.sflag [#allocation7], 1
    %24 = vsyncpa %s23, 0
    loop: start=0, step=1, limit=10
    $region2: #{tpu_custom_call.1} parent=1 // loop_pre_header
      _
    $region3: #{tpu_custom_call.1} parent=1 // loop_header
      %s26 = sphi 0, %s30
      %p27 = scmp.ge.s32.totalorder %s26, 10
      %s33 = sphi 0, %s45
      %s34 = sphi 0, %s41
      %s35 = sphi 0, %s33
      %s36 = sphi 0, %s34
      %s37 = sphi 0, %s35
      %s38 = sphi 0, %s36
      %s46 = sphi 0, %s46
      %s48 = sphi 0, %s46
      %s49 = sphi 0, %s48
      %s63 = sphi 0, %s49
      %s67 = sphi 0, %s67
      %s69 = sphi 0, %s67
      %s70 = sphi 0, %s69
      %s84 = sphi 0, %s70
      %s94 = sphi 0, %s96
      %s97 = sphi 0, %s94
      %s98 = sphi 0, %s97
      %s114 = sphi 0, %s98
      %s124 = sphi 0, %s126
      %s127 = sphi 0, %s124
      %s128 = sphi 0, %s127
      %s144 = sphi 0, %s128
      %s154 = sphi 0, %s156
      %s157 = sphi 0, %s154
      %s158 = sphi 0, %s157
      %s174 = sphi 0, %s158
      %s182 = sphi 0, %s184
      %s185 = sphi 0, %s182
      %s186 = sphi 0, %s185
      %s202 = sphi 0, %s186
      %s208 = sphi 0, %s210
      %s211 = sphi 0, %s208
      %s212 = sphi 0, %s211
      %s228 = sphi 0, %s212
    $region4: #{tpu_custom_call.1} parent=1 // loop_header_branch
      %29 = sbr.rel (%p27) target = $region8
    $region5: #{tpu_custom_call.1} parent=1 // loop_body
      %s31 = ssub.s32 %s26, 1
      %s32 = ssub.s32 %s26, 2
      %s39 = sadd.s32 1, %s34
      %p40 = scmp.ge.s32.totalorder %s39, 4
      %s41 = scalar_select %p40, 0, %s39
      %s42 = sadd.s32 1, %s33
      %s43 = scalar_select %p40, %s42, %s33
      %p44 = scmp.ge.s32.totalorder %s43, 2
      %s45 = scalar_select %p44, 0, %s43
      %s47 = sadd.s32 %s46, 1
      %p50 = scmp.eq.s32.totalorder %s26, 7
      %p51 = scmp.ne.s32.totalorder %s46, %s48
      %p52 = scmp.eq.s32.totalorder %s26, 0
      %p53 = por %p51, %p52
      %p54 = scmp.ne.s32.totalorder %s46, %s48
      %p55 = scmp.eq.s32.totalorder %s31, 7
      %p56 = por %p54, %p55
      %p57 = scmp.ne.s32.totalorder %s48, %s49
      %p58 = scmp.eq.s32.totalorder %s31, 0
      %p59 = por %p57, %p58
      %p60 = scmp.ne.s32.totalorder %s48, %s49
      %p61 = scmp.eq.s32.totalorder %s32, 7
      %p62 = por %p60, %p61
      %p64 = scmp.ne.s32.totalorder %s49, %s63
      %p65 = scmp.eq.s32.totalorder %s32, 0
      %p66 = por %p64, %p65
      %s68 = sadd.s32 %s67, 1
      %p71 = scmp.eq.s32.totalorder %s26, 7
      %p72 = scmp.ne.s32.totalorder %s67, %s69
      %p73 = scmp.eq.s32.totalorder %s26, 0
      %p74 = por %p72, %p73
      %p75 = scmp.ne.s32.totalorder %s67, %s69
      %p76 = scmp.eq.s32.totalorder %s31, 7
      %p77 = por %p75, %p76
      %p78 = scmp.ne.s32.totalorder %s69, %s70
      %p79 = scmp.eq.s32.totalorder %s31, 0
      %p80 = por %p78, %p79
      %p81 = scmp.ne.s32.totalorder %s69, %s70
      %p82 = scmp.eq.s32.totalorder %s32, 7
      %p83 = por %p81, %p82
      %p85 = scmp.ne.s32.totalorder %s70, %s84
      %p86 = scmp.eq.s32.totalorder %s32, 0
      %p87 = por %p85, %p86
      %s88 = ssub.s32 3, %s34
      %s89 = ssub.s32 3, %s41
      %s90 = ssub.s32 %s33, %s45
      %s91 = ssub.s32 %s88, %s89
      %s92 = sor.u32 %s90, %s91
      %p93 = scmp.eq.s32.totalorder %s92, 0
      %s95 = sadd.s32 %s94, 1
      %s96 = scalar_select %p93, %s94, %s95
      %p99 = pneg %p93
      %p100 = scmp.eq.s32.totalorder %s26, 7
      %p101 = por %p99, %p100
      %p102 = scmp.ne.s32.totalorder %s94, %s97
      %p103 = scmp.eq.s32.totalorder %s26, 0
      %p104 = por %p102, %p103
      %p105 = scmp.ne.s32.totalorder %s94, %s97
      %p106 = scmp.eq.s32.totalorder %s31, 7
      %p107 = por %p105, %p106
      %p108 = scmp.ne.s32.totalorder %s97, %s98
      %p109 = scmp.eq.s32.totalorder %s31, 0
      %p110 = por %p108, %p109
      %p111 = scmp.ne.s32.totalorder %s97, %s98
      %p112 = scmp.eq.s32.totalorder %s32, 7
      %p113 = por %p111, %p112
      %p115 = scmp.ne.s32.totalorder %s98, %s114
      %p116 = scmp.eq.s32.totalorder %s32, 0
      %p117 = por %p115, %p116
      %s118 = ssub.s32 3, %s34
      %s119 = ssub.s32 3, %s41
      %s120 = ssub.s32 %s33, %s45
      %s121 = ssub.s32 %s118, %s119
      %s122 = sor.u32 %s120, %s121
      %p123 = scmp.eq.s32.totalorder %s122, 0
      %s125 = sadd.s32 %s124, 1
      %s126 = scalar_select %p123, %s124, %s125
      %p129 = pneg %p123
      %p130 = scmp.eq.s32.totalorder %s26, 7
      %p131 = por %p129, %p130
      %p132 = scmp.ne.s32.totalorder %s124, %s127
      %p133 = scmp.eq.s32.totalorder %s26, 0
      %p134 = por %p132, %p133
      %p135 = scmp.ne.s32.totalorder %s124, %s127
      %p136 = scmp.eq.s32.totalorder %s31, 7
      %p137 = por %p135, %p136
      %p138 = scmp.ne.s32.totalorder %s127, %s128
      %p139 = scmp.eq.s32.totalorder %s31, 0
      %p140 = por %p138, %p139
      %p141 = scmp.ne.s32.totalorder %s127, %s128
      %p142 = scmp.eq.s32.totalorder %s32, 7
      %p143 = por %p141, %p142
      %p145 = scmp.ne.s32.totalorder %s128, %s144
      %p146 = scmp.eq.s32.totalorder %s32, 0
      %p147 = por %p145, %p146
      %s148 = ssub.s32 3, %s34
      %s149 = ssub.s32 3, %s41
      %s150 = ssub.s32 %s33, %s45
      %s151 = ssub.s32 %s148, %s149
      %s152 = sor.u32 %s150, %s151
      %p153 = scmp.eq.s32.totalorder %s152, 0
      %s155 = sadd.s32 %s154, 1
      %s156 = scalar_select %p153, %s154, %s155
      %p159 = pneg %p153
      %p160 = scmp.eq.s32.totalorder %s26, 7
      %p161 = por %p159, %p160
      %p162 = scmp.ne.s32.totalorder %s154, %s157
      %p163 = scmp.eq.s32.totalorder %s26, 0
      %p164 = por %p162, %p163
      %p165 = scmp.ne.s32.totalorder %s154, %s157
      %p166 = scmp.eq.s32.totalorder %s31, 7
      %p167 = por %p165, %p166
      %p168 = scmp.ne.s32.totalorder %s157, %s158
      %p169 = scmp.eq.s32.totalorder %s31, 0
      %p170 = por %p168, %p169
      %p171 = scmp.ne.s32.totalorder %s157, %s158
      %p172 = scmp.eq.s32.totalorder %s32, 7
      %p173 = por %p171, %p172
      %p175 = scmp.ne.s32.totalorder %s158, %s174
      %p176 = scmp.eq.s32.totalorder %s32, 0
      %p177 = por %p175, %p176
      %s178 = ssub.s32 3, %s34
      %s179 = ssub.s32 3, %s41
      %s180 = ssub.s32 %s178, %s179
      %p181 = scmp.eq.s32.totalorder %s180, 0
      %s183 = sadd.s32 %s182, 1
      %s184 = scalar_select %p181, %s182, %s183
      %p187 = pneg %p181
      %p188 = scmp.eq.s32.totalorder %s26, 7
      %p189 = por %p187, %p188
      %p190 = scmp.ne.s32.totalorder %s182, %s185
      %p191 = scmp.eq.s32.totalorder %s26, 0
      %p192 = por %p190, %p191
      %p193 = scmp.ne.s32.totalorder %s182, %s185
      %p194 = scmp.eq.s32.totalorder %s31, 7
      %p195 = por %p193, %p194
      %p196 = scmp.ne.s32.totalorder %s185, %s186
      %p197 = scmp.eq.s32.totalorder %s31, 0
      %p198 = por %p196, %p197
      %p199 = scmp.ne.s32.totalorder %s185, %s186
      %p200 = scmp.eq.s32.totalorder %s32, 7
      %p201 = por %p199, %p200
      %p203 = scmp.ne.s32.totalorder %s186, %s202
      %p204 = scmp.eq.s32.totalorder %s32, 0
      %p205 = por %p203, %p204
      %s206 = ssub.s32 %s33, %s45
      %p207 = scmp.eq.s32.totalorder %s206, 0
      %s209 = sadd.s32 %s208, 1
      %s210 = scalar_select %p207, %s208, %s209
      %p213 = pneg %p207
      %p214 = scmp.eq.s32.totalorder %s26, 7
      %p215 = por %p213, %p214
      %p216 = scmp.ne.s32.totalorder %s208, %s211
      %p217 = scmp.eq.s32.totalorder %s26, 0
      %p218 = por %p216, %p217
      %p219 = scmp.ne.s32.totalorder %s208, %s211
      %p220 = scmp.eq.s32.totalorder %s31, 7
      %p221 = por %p219, %p220
      %p222 = scmp.ne.s32.totalorder %s211, %s212
      %p223 = scmp.eq.s32.totalorder %s31, 0
      %p224 = por %p222, %p223
      %p225 = scmp.ne.s32.totalorder %s211, %s212
      %p226 = scmp.eq.s32.totalorder %s32, 7
      %p227 = por %p225, %p226
      %p229 = scmp.ne.s32.totalorder %s212, %s228
      %p230 = scmp.eq.s32.totalorder %s32, 0
      %p231 = por %p229, %p230
      %p232 = scmp.le.s32.totalorder 1, %s26
      %p233 = scmp.lt.s32.totalorder %s26, 9
      %p234 = pnand %p232, %p233
      %p235 = pneg %p234
      // Predicated region
      $region9: #{tpu_custom_call.1} parent=5 // pred_check
        _
      $region10: #{tpu_custom_call.1} parent=5 // pred_check_branch
        %237 = sbr.rel (%p234) target = $region12
      $region11: #{tpu_custom_call.1} parent=5 // pred_region
        %s238 = ssub.s32 %s26, 1
        // Predicated region
        $region13: #{tpu_custom_call.1} parent=11 // pred_check
          %p239 = pneg %p59
        $region14: #{tpu_custom_call.1} parent=11 // pred_check_branch
          %241 = sbr.rel (%p239) target = $region16
        $region15: #{tpu_custom_call.1} parent=11 // pred_region
          %s243 = ssub.s32 16, 16
          %244 = vsyncadd [#allocation8], %s243
          %247 = dma.hbm_to_smem %s0, 16, [#allocation5], [#allocation8]
        $region16: #{tpu_custom_call.1} parent=11 // pred_fallthru
          _
        // Predicated region
        $region17: #{tpu_custom_call.1} parent=11 // pred_check
          %p248 = pneg %p80
        $region18: #{tpu_custom_call.1} parent=11 // pred_check_branch
          %250 = sbr.rel (%p248) target = $region20
        $region19: #{tpu_custom_call.1} parent=11 // pred_region
          %s252 = ssub.s32 16, 16
          %253 = vsyncadd [#allocation9], %s252
          %s255 = sshll.u32 %s1, 4
          %s256 = int_to_ptr.vmem [resolvable:$true] %s255
          %258 = dma.vmem_to_smem %s256, 16, [#allocation10], [#allocation9]
        $region20: #{tpu_custom_call.1} parent=11 // pred_fallthru
          _
      $region12: #{tpu_custom_call.1} parent=5 // pred_fallthru
        _
      %p259 = scmp.lt.s32.totalorder %s26, 8
      // Predicated region
      $region21: #{tpu_custom_call.1} parent=5 // pred_check
        %p260 = pneg %p259
      $region22: #{tpu_custom_call.1} parent=5 // pred_check_branch
        %262 = sbr.rel (%p260) target = $region24
      $region23: #{tpu_custom_call.1} parent=5 // pred_region
        // Predicated region
        $region25: #{tpu_custom_call.1} parent=23 // pred_check
          %p263 = pneg %p104
        $region26: #{tpu_custom_call.1} parent=23 // pred_check_branch
          %265 = sbr.rel (%p263) target = $region28
        $region27: #{tpu_custom_call.1} parent=23 // pred_region
          %s266 = sand.u32 %s94, 1
          %s267 = scalar_lea.sflag [#allocation6], %s266
          %s268 = sand.u32 %s94, 1
          %s269 = smul.addr %s268, 24
          %s270 = scalar_lea.vmem [#allocation11], %s269
          %s271 = ssub.s32 3, %s34
          %s273 = ssub.s32 384, 384
          %274 = vsyncadd %s267, %s273
          %s275 = smul.addr %s33, 12
          %s276 = sadd.s32 %s271, %s275
          %s277 = smul.addr %s276, 128
          %s278 = scalar_lea.hbm %s2, %s277
          %s279 = sshll.u32 %s270, 4
          %s280 = int_to_ptr.vmem [resolvable:$true] %s279
          %285 = dma.hbm_to_vmem [thread:$0]  %s278, 384, %s280, %s267, 512, 128, 8
        $region28: #{tpu_custom_call.1} parent=23 // pred_fallthru
          _
        // Predicated region
        $region29: #{tpu_custom_call.1} parent=23 // pred_check
          %p286 = pneg %p134
        $region30: #{tpu_custom_call.1} parent=23 // pred_check_branch
          %288 = sbr.rel (%p286) target = $region32
        $region31: #{tpu_custom_call.1} parent=23 // pred_region
          %s289 = sand.u32 %s26, 1
          %s290 = scalar_lea.sflag [#allocation13], %s289
          %s291 = sand.u32 %s124, 1
          %s292 = smul.addr %s291, 16
          %s293 = scalar_lea.vmem [#allocation12], %s292
          %s294 = ssub.s32 3, %s34
          %s296 = ssub.s32 256, 256
          %297 = vsyncadd %s290, %s296
          %s298 = smul.addr %s33, 8
          %s299 = sadd.s32 %s294, %s298
          %s300 = smul.addr %s299, 128
          %s301 = scalar_lea.hbm %s3, %s300
          %s302 = sshll.u32 %s293, 4
          %s303 = int_to_ptr.vmem [resolvable:$true] %s302
          %308 = dma.hbm_to_vmem [thread:$0]  %s301, 256, %s303, %s290, 512, 128, 8
        $region32: #{tpu_custom_call.1} parent=23 // pred_fallthru
          _
        // Predicated region
        $region33: #{tpu_custom_call.1} parent=23 // pred_check
          %p309 = pneg %p164
        $region34: #{tpu_custom_call.1} parent=23 // pred_check_branch
          %311 = sbr.rel (%p309) target = $region36
        $region35: #{tpu_custom_call.1} parent=23 // pred_region
          %s312 = sand.u32 %s26, 1
          %s313 = scalar_lea.sflag [#allocation13], %s312
          %s314 = sand.u32 %s154, 1
          %s315 = smul.addr %s314, 16
          %s316 = scalar_lea.vmem [#allocation14], %s315
          %s317 = ssub.s32 3, %s34
          %s319 = ssub.s32 256, 256
          %320 = vsyncadd %s313, %s319
          %s321 = smul.addr %s33, 8
          %s322 = sadd.s32 %s317, %s321
          %s323 = smul.addr %s322, 128
          %s324 = scalar_lea.hbm %s4, %s323
          %s325 = sshll.u32 %s316, 4
          %s326 = int_to_ptr.vmem [resolvable:$true] %s325
          %331 = dma.hbm_to_vmem [thread:$0]  %s324, 256, %s326, %s313, 512, 128, 8
        $region36: #{tpu_custom_call.1} parent=23 // pred_fallthru
          _
        // Predicated region
        $region37: #{tpu_custom_call.1} parent=23 // pred_check
          %p332 = pneg %p192
        $region38: #{tpu_custom_call.1} parent=23 // pred_check_branch
          %334 = sbr.rel (%p332) target = $region40
        $region39: #{tpu_custom_call.1} parent=23 // pred_region
          %s335 = sand.u32 %s182, 1
          %s336 = scalar_lea.sflag [#allocation16], %s335
          %s337 = sand.u32 %s182, 1
          %s338 = smul.addr %s337, 8
          %s339 = scalar_lea.vmem [#allocation15], %s338
          %s340 = ssub.s32 3, %s34
          %s342 = ssub.s32 128, 128
          %343 = vsyncadd %s336, %s342
          %s344 = smul.addr %s340, 128
          %s345 = scalar_lea.hbm %s5, %s344
          %s347 = sshll.u32 %s339, 4
          %s348 = int_to_ptr.vmem [resolvable:$true] %s347
          %350 = dma.hbm_to_vmem [thread:$0]  %s345, 128, %s348, %s336
        $region40: #{tpu_custom_call.1} parent=23 // pred_fallthru
          _
      $region24: #{tpu_custom_call.1} parent=5 // pred_fallthru
        _
      %p351 = scmp.le.s32.totalorder 1, %s26
      %p352 = scmp.lt.s32.totalorder %s26, 9
      %p353 = pnand %p351, %p352
      %p354 = pneg %p353
      // Predicated region
      $region41: #{tpu_custom_call.1} parent=5 // pred_check
        _
      $region42: #{tpu_custom_call.1} parent=5 // pred_check_branch
        %356 = sbr.rel (%p353) target = $region44
      $region43: #{tpu_custom_call.1} parent=5 // pred_region
        %s357 = ssub.s32 %s26, 1
        // Predicated region
        $region45: #{tpu_custom_call.1} parent=43 // pred_check
          %p358 = pneg %p59
        $region46: #{tpu_custom_call.1} parent=43 // pred_check_branch
          %360 = sbr.rel (%p358) target = $region48
        $region47: #{tpu_custom_call.1} parent=43 // pred_region
          %361 = dma.done [#allocation8], 16
        $region48: #{tpu_custom_call.1} parent=43 // pred_fallthru
          _
        // Predicated region
        $region49: #{tpu_custom_call.1} parent=43 // pred_check
          %p362 = pneg %p80
        $region50: #{tpu_custom_call.1} parent=43 // pred_check_branch
          %364 = sbr.rel (%p362) target = $region52
        $region51: #{tpu_custom_call.1} parent=43 // pred_region
          %365 = dma.done [#allocation9], 16
        $region52: #{tpu_custom_call.1} parent=43 // pred_fallthru
          _
        %s366 = sand.u32 %s97, 1
        %s367 = scalar_lea.sflag [#allocation6], %s366
        %s368 = sand.u32 %s97, 1
        %s369 = smul.addr %s368, 24
        %s370 = scalar_lea.vmem [#allocation11], %s369
        // Predicated region
        $region53: #{tpu_custom_call.1} parent=43 // pred_check
          %p371 = pneg %p110
        $region54: #{tpu_custom_call.1} parent=43 // pred_check_branch
          %373 = sbr.rel (%p371) target = $region56
        $region55: #{tpu_custom_call.1} parent=43 // pred_region
          %374 = dma.done %s367, 384
        $region56: #{tpu_custom_call.1} parent=43 // pred_fallthru
          _
        %s375 = sand.u32 %s31, 1
        %s376 = scalar_lea.sflag [#allocation13], %s375
        %s377 = sand.u32 %s127, 1
        %s378 = smul.addr %s377, 16
        %s379 = scalar_lea.vmem [#allocation12], %s378
        // Predicated region
        $region57: #{tpu_custom_call.1} parent=43 // pred_check
          %p380 = pneg %p140
        $region58: #{tpu_custom_call.1} parent=43 // pred_check_branch
          %382 = sbr.rel (%p380) target = $region60
        $region59: #{tpu_custom_call.1} parent=43 // pred_region
          %383 = dma.done %s376, 256
        $region60: #{tpu_custom_call.1} parent=43 // pred_fallthru
          _
        %s384 = sand.u32 %s31, 1
        %s385 = scalar_lea.sflag [#allocation13], %s384
        %s386 = sand.u32 %s157, 1
        %s387 = smul.addr %s386, 16
        %s388 = scalar_lea.vmem [#allocation14], %s387
        // Predicated region
        $region61: #{tpu_custom_call.1} parent=43 // pred_check
          %p389 = pneg %p170
        $region62: #{tpu_custom_call.1} parent=43 // pred_check_branch
          %391 = sbr.rel (%p389) target = $region64
        $region63: #{tpu_custom_call.1} parent=43 // pred_region
          %392 = dma.done %s385, 256
        $region64: #{tpu_custom_call.1} parent=43 // pred_fallthru
          _
        %s393 = sand.u32 %s185, 1
        %s394 = scalar_lea.sflag [#allocation16], %s393
        %s395 = sand.u32 %s185, 1
        %s396 = smul.addr %s395, 8
        %s397 = scalar_lea.vmem [#allocation15], %s396
        // Predicated region
        $region65: #{tpu_custom_call.1} parent=43 // pred_check
          %p398 = pneg %p198
        $region66: #{tpu_custom_call.1} parent=43 // pred_check_branch
          %400 = sbr.rel (%p398) target = $region68
        $region67: #{tpu_custom_call.1} parent=43 // pred_region
          %401 = dma.done %s394, 128
        $region68: #{tpu_custom_call.1} parent=43 // pred_fallthru
          _
        %402 = sfence
        %p403 = pneg %p59
        %p404 = pneg %p56
        %p405 = pneg %p80
        %p406 = pneg %p77
        %s407 = sand.u32 %s97, 1
        %s408 = scalar_lea.sflag [#allocation6], %s407
        %s409 = sand.u32 %s97, 1
        %s410 = smul.addr %s409, 24
        %s411 = scalar_lea.vmem [#allocation11], %s410
        %p412 = pneg %p110
        %p413 = pneg %p107
        %s414 = sand.u32 %s31, 1
        %s415 = scalar_lea.sflag [#allocation13], %s414
        %s416 = sand.u32 %s127, 1
        %s417 = smul.addr %s416, 16
        %s418 = scalar_lea.vmem [#allocation12], %s417
        %p419 = pneg %p140
        %p420 = pneg %p137
        %s421 = sand.u32 %s31, 1
        %s422 = scalar_lea.sflag [#allocation13], %s421
        %s423 = sand.u32 %s157, 1
        %s424 = smul.addr %s423, 16
        %s425 = scalar_lea.vmem [#allocation14], %s424
        %p426 = pneg %p170
        %p427 = pneg %p167
        %s428 = sand.u32 %s185, 1
        %s429 = scalar_lea.sflag [#allocation16], %s428
        %s430 = sand.u32 %s185, 1
        %s431 = smul.addr %s430, 8
        %s432 = scalar_lea.vmem [#allocation15], %s431
        %p433 = pneg %p198
        %p434 = pneg %p195
        %p435 = pneg %p224
        %p436 = pneg %p221
        %s437 = sand.u32 %s211, 1
        %s438 = scalar_lea.sflag [#allocation7], %s437
        %s439 = sand.u32 %s211, 1
        %s440 = scalar_lea.vmem [#allocation17], %s439
        %s441 = ssub.s32 3, %s36
        %s442 = ssub.s32 3, %s36
        %s443 = ssub.s32 3, %s36
        %s444 = ssub.s32 3, %s36
        %s445 = ssub.s32 3, %s36
        %p446 = scmp.eq.s32.totalorder %s36, 0
        // Predicated region
        $region69: #{tpu_custom_call.1} parent=43 // pred_check
          %p447 = pneg %p446
        $region70: #{tpu_custom_call.1} parent=43 // pred_check_branch
          %449 = sbr.rel (%p447) target = $region72
        $region71: #{tpu_custom_call.1} parent=43 // pred_region
          %450 = vst [vmem:[#allocation3] sm:$0xff] 0.0
          %451 = vst [vmem:[#allocation4] sm:$0xff] 0.0
        $region72: #{tpu_custom_call.1} parent=43 // pred_fallthru
          _
        %v452 = vld [vmem:[#allocation2] sm:$0x1]
        %v453 = vld [vmem:[#allocation2 + $0x1] sm:$0x1]
        %v454 = vld [vmem:[#allocation2 + $0x2] sm:$0x1]
        %v455 = vld [vmem:[%s370] sm:$0x1]
        %v456 = vld [vmem:[%s370 + $0x8] sm:$0x1]
        %v457 = vld [vmem:[%s370 + $0x10] sm:$0x1]
        %458 = vst [vmem:[#allocation2] sm:$0x1] %v455
        %459 = vst [vmem:[#allocation2 + $0x1] sm:$0x1] %v456
        %460 = vst [vmem:[#allocation2 + $0x2] sm:$0x1] %v457
        %s461 = sld [smem:[#allocation5]]
        %s462 = sld [smem:[#allocation5 + $0x1]]
        %s463 = sld [smem:[#allocation5 + $0x2]]
        %s464 = sld [smem:[#allocation5 + $0x3]]
        %s465 = sld [smem:[#allocation5 + $0x4]]
        %s466 = sld [smem:[#allocation5 + $0x5]]
        %s467 = sld [smem:[#allocation5 + $0x6]]
        %s468 = sld [smem:[#allocation5 + $0x7]]
        %s469 = sld [smem:[#allocation5 + $0x8]]
        %s470 = sld [smem:[#allocation5 + $0x9]]
        %s471 = sld [smem:[#allocation5 + $0xa]]
        %s472 = sld [smem:[#allocation5 + $0xb]]
        %s473 = sld [smem:[#allocation10]]
        %s474 = sld [smem:[#allocation10 + $0x1]]
        %s475 = sld [smem:[#allocation10 + $0x2]]
        %s476 = sld [smem:[#allocation10 + $0x3]]
        %s477 = sld [smem:[#allocation10 + $0x4]]
        %s478 = sld [smem:[#allocation10 + $0x5]]
        %s479 = sld [smem:[#allocation10 + $0x6]]
        %s480 = sld [smem:[#allocation10 + $0x7]]
        %s481 = sld [smem:[#allocation10 + $0x8]]
        %s482 = sld [smem:[#allocation10 + $0x9]]
        %s483 = sld [smem:[#allocation10 + $0xa]]
        %s484 = sld [smem:[#allocation10 + $0xb]]
        %v485 = vlaneseq
        %v486 = vand.u32 %v485, 127
        %v487 = vlaneseq
        %v488 = vshrl.u32 %v487, 7
        %vm489 = vcmp.lt.s32.totalorder %v486, 127
        %v490 = vsel %vm489, 1, 0
        %v491 = vcvt.s32.f32 %v490
        %v492 = vld [vmem:[%s370] sm:$0xff]
        %493 = vrot.lane.b32.xlu0 %v492, 127
        %v494 = vpop.permute.xlu0 %493
        %v495 = vrot.slane %v492, 1
        %vm496 = vcmp.eq.s32.totalorder %v488, 7
        %v498 = vlaneseq
        %v499 = vshrl.u32 %v498, 7
        %v500 = vsub.s32 0, %v499
        %v501 = vrot.slane %v452, %v500
        %v503 = vsel %vm496, %v501, %v495
        %s504 = sadd.s32 0, 8
        %s505 = scalar_lea.vmem %s370, %s504 [#allocation11]
        %v506 = vld [vmem:[%s505] sm:$0xff]
        %507 = vrot.lane.b32.xlu0 %v506, 127
        %v508 = vpop.permute.xlu0 %507
        %v509 = vrot.slane %v506, 1
        %v511 = vlaneseq
        %v512 = vshrl.u32 %v511, 7
        %v513 = vsub.s32 0, %v512
        %v514 = vrot.slane %v453, %v513
        %v516 = vsel %vm496, %v514, %v509
        %s517 = sadd.s32 0, 16
        %s518 = scalar_lea.vmem %s370, %s517 [#allocation11]
        %v519 = vld [vmem:[%s518] sm:$0xff]
        %520 = vrot.lane.b32.xlu0 %v519, 127
        %v521 = vpop.permute.xlu0 %520
        %v522 = vrot.slane %v519, 1
        %v524 = vlaneseq
        %v525 = vshrl.u32 %v524, 7
        %v526 = vsub.s32 0, %v525
        %v527 = vrot.slane %v454, %v526
        %v529 = vsel %vm496, %v527, %v522
        %v530 = vstv %s461
        %v531 = vmul.f32 %v492, %v530
        %v532 = vadd.f32 %v531, 0.0
        %v533 = vstv %s462
        %v534 = vmul.f32 %v494, %v533
        %v535 = vadd.f32 %v532, %v534
        %v536 = vstv %s473
        %v537 = vmul.f32 %v492, %v536
        %v538 = vadd.f32 %v537, 0.0
        %v539 = vstv %s474
        %v540 = vmul.f32 %v503, %v539
        %v541 = vadd.f32 %v538, %v540
        %v542 = vstv %s463
        %v543 = vmul.f32 %v506, %v542
        %v544 = vadd.f32 %v535, %v543
        %v545 = vstv %s464
        %v546 = vmul.f32 %v508, %v545
        %v547 = vadd.f32 %v544, %v546
        %v548 = vstv %s475
        %v549 = vmul.f32 %v506, %v548
        %v550 = vadd.f32 %v541, %v549
        %v551 = vstv %s476
        %v552 = vmul.f32 %v516, %v551
        %v553 = vadd.f32 %v550, %v552
        %v554 = vstv %s465
        %v555 = vmul.f32 %v519, %v554
        %v556 = vadd.f32 %v547, %v555
        %v557 = vstv %s466
        %v558 = vmul.f32 %v521, %v557
        %v559 = vadd.f32 %v556, %v558
        %v560 = vstv %s477
        %v561 = vmul.f32 %v519, %v560
        %v562 = vadd.f32 %v553, %v561
        %v563 = vstv %s478
        %v564 = vmul.f32 %v529, %v563
        %v565 = vadd.f32 %v562, %v564
        %v566 = vld [vmem:[%s379] sm:$0xff]
        %v567 = vsub.f32 %v559, %v566
        %v568 = vand.u32 2147483647, %v567
        %v569 = vadd.f32 %v568, 0.0
        %v570 = vld [vmem:[%s388] sm:$0xff]
        %v571 = vsub.f32 %v565, %v570
        %v572 = vand.u32 2147483647, %v571
        %v573 = vadd.f32 %v572, 0.0
        %v574 = vstv %s467
        %v575 = vmul.f32 %v492, %v574
        %v576 = vadd.f32 %v575, 0.0
        %v577 = vstv %s468
        %v578 = vmul.f32 %v494, %v577
        %v579 = vadd.f32 %v576, %v578
        %v580 = vstv %s479
        %v581 = vmul.f32 %v492, %v580
        %v582 = vadd.f32 %v581, 0.0
        %v583 = vstv %s480
        %v584 = vmul.f32 %v503, %v583
        %v585 = vadd.f32 %v582, %v584
        %v586 = vstv %s469
        %v587 = vmul.f32 %v506, %v586
        %v588 = vadd.f32 %v579, %v587
        %v589 = vstv %s470
        %v590 = vmul.f32 %v508, %v589
        %v591 = vadd.f32 %v588, %v590
        %v592 = vstv %s481
        %v593 = vmul.f32 %v506, %v592
        %v594 = vadd.f32 %v585, %v593
        %v595 = vstv %s482
        %v596 = vmul.f32 %v516, %v595
        %v597 = vadd.f32 %v594, %v596
        %v598 = vstv %s471
        %v599 = vmul.f32 %v519, %v598
        %v600 = vadd.f32 %v591, %v599
        %v601 = vstv %s472
        %v602 = vmul.f32 %v521, %v601
        %v603 = vadd.f32 %v600, %v602
        %v604 = vstv %s483
        %v605 = vmul.f32 %v519, %v604
        %v606 = vadd.f32 %v597, %v605
        %v607 = vstv %s484
        %v608 = vmul.f32 %v529, %v607
        %v609 = vadd.f32 %v606, %v608
        %s610 = scalar_lea.vmem %s379, %s504 [#allocation12]
        %v611 = vld [vmem:[%s610] sm:$0xff]
        %v612 = vsub.f32 %v603, %v611
        %v613 = vand.u32 2147483647, %v612
        %v614 = vadd.f32 %v569, %v613
        %s615 = scalar_lea.vmem %s388, %s504 [#allocation14]
        %v616 = vld [vmem:[%s615] sm:$0xff]
        %v617 = vsub.f32 %v609, %v616
        %v618 = vand.u32 2147483647, %v617
        %v619 = vadd.f32 %v573, %v618
        %v620 = vld [vmem:[%s397] sm:$0xff]
        %s621 = smul.u32 %s445, 8
        %s622 = sadd.s32 %s621, 0
        %v623 = vstv %s622
        %v624 = vadd.s32 %v623, %v488
        %vm625 = vcmp.lt.s32.totalorder %v624, 31
        %v626 = vld [vmem:[#allocation3] sm:$0xff]
        %v627 = vmul.f32 %v620, %v491
        %v628 = vmul.f32 %v614, %v627
        %v629 = vadd.f32 %v626, %v628
        %630 = vst [vmem:[#allocation3] sm:$0xff] %v629
        %v631 = vld [vmem:[#allocation4] sm:$0xff]
        %v632 = vsel %vm625, %v619, 0.0
        %v633 = vmul.f32 %v632, %v620
        %v634 = vadd.f32 %v631, %v633
        %635 = vst [vmem:[#allocation4] sm:$0xff] %v634
        %p636 = scmp.eq.s32.totalorder %s36, 3
        // Predicated region
        $region73: #{tpu_custom_call.1} parent=43 // pred_check
          %p637 = pneg %p636
        $region74: #{tpu_custom_call.1} parent=43 // pred_check_branch
          %639 = sbr.rel (%p637) target = $region76
        $region75: #{tpu_custom_call.1} parent=43 // pred_region
          %v640 = vld [vmem:[#allocation3] sm:$0xff]
          %641 = vadd.xlane.f32.xlu0 %v640
          %v642 = vpop.xlane.xlu0 %641
          %v643 = vrot.slane %v642, 4
          %v644 = vadd.f32 %v642, %v643
          %v645 = vrot.slane %v644, 2
          %v646 = vadd.f32 %v644, %v645
          %v647 = vrot.slane %v646, 1
          %v648 = vadd.f32 %v646, %v647
          %s649 = vtos %v648
          %v650 = vld [vmem:[#allocation4] sm:$0xff]
          %651 = vadd.xlane.f32.xlu0 %v650
          %v652 = vpop.xlane.xlu0 %651
          %v653 = vrot.slane %v652, 4
          %v654 = vadd.f32 %v652, %v653
          %v655 = vrot.slane %v654, 2
          %v656 = vadd.f32 %v654, %v655
          %v657 = vrot.slane %v656, 1
          %v658 = vadd.f32 %v656, %v657
          %s659 = vtos %v658
          %vm660 = vcmp.eq.s32.totalorder %v486, 0
          %v661 = vstv %s649
          %v662 = vsel %vm660, %v661, 0.0
          %vm663 = vcmp.eq.s32.totalorder %v486, 1
          %v664 = vstv %s659
          %v665 = vsel %vm663, %v664, 0.0
          %v666 = vadd.f32 %v662, %v665
          %667 = vst [vmem:[%s440] sm:$0x1] %v666
        $region76: #{tpu_custom_call.1} parent=43 // pred_fallthru
          _
        %s668 = sand.u32 %s211, 1
        %s669 = scalar_lea.sflag [#allocation7], %s668
        %s670 = sand.u32 %s211, 1
        %s671 = scalar_lea.vmem [#allocation17], %s670
        // Predicated region
        $region77: #{tpu_custom_call.1} parent=43 // pred_check
          %p672 = pneg %p221
        $region78: #{tpu_custom_call.1} parent=43 // pred_check_branch
          %674 = sbr.rel (%p672) target = $region80
        $region79: #{tpu_custom_call.1} parent=43 // pred_region
          %s676 = ssub.s32 16, 16
          %677 = vsyncadd %s669, %s676
          %s678 = smul.addr %s35, 16
          %s679 = scalar_lea.hbm %s6, %s678
          %s681 = sshll.u32 %s671, 4
          %s682 = int_to_ptr.vmem [resolvable:$true] %s681
          %684 = dma.vmem_to_hbm [thread:$0]  %s682, 16, %s679, %s669
        $region80: #{tpu_custom_call.1} parent=43 // pred_fallthru
          _
      $region44: #{tpu_custom_call.1} parent=5 // pred_fallthru
        _
      %p685 = scmp.le.s32.totalorder 2, %s26
      // Predicated region
      $region81: #{tpu_custom_call.1} parent=5 // pred_check
        %p686 = pneg %p685
      $region82: #{tpu_custom_call.1} parent=5 // pred_check_branch
        %688 = sbr.rel (%p686) target = $region84
      $region83: #{tpu_custom_call.1} parent=5 // pred_region
        %s689 = ssub.s32 %s26, 2
        // Predicated region
        $region85: #{tpu_custom_call.1} parent=83 // pred_check
          %p690 = pneg %p227
        $region86: #{tpu_custom_call.1} parent=83 // pred_check_branch
          %692 = sbr.rel (%p690) target = $region88
        $region87: #{tpu_custom_call.1} parent=83 // pred_region
          %s693 = sand.u32 %s212, 1
          %s694 = scalar_lea.sflag [#allocation7], %s693
          %s695 = sand.u32 %s212, 1
          %s696 = scalar_lea.vmem [#allocation17], %s695
          %697 = dma.done %s694, 16
        $region88: #{tpu_custom_call.1} parent=83 // pred_fallthru
          _
      $region84: #{tpu_custom_call.1} parent=5 // pred_fallthru
        _
    $region6: #{tpu_custom_call.1} parent=1 // loop_footer
      %s30 = sadd.s32 1, %s26
    $region7: #{tpu_custom_call.1} parent=1 // loop_footer_branch
      %25 = sbr.rel target = $region3
    $region8: #{tpu_custom_call.1} parent=1 // loop_exit
      _
    %698 = vsyncpa [#allocation6], 1
    %s699 = scalar_lea.sflag [#allocation6], 1
    %700 = vsyncpa %s699, 1
    %701 = vsyncpa [#allocation13], 1
    %s702 = scalar_lea.sflag [#allocation13], 1
    %703 = vsyncpa %s702, 1
    %704 = vsyncpa [#allocation16], 1
    %s705 = scalar_lea.sflag [#allocation16], 1
    %706 = vsyncpa %s705, 1
    %707 = vsyncpa [#allocation7], 1
    %s708 = scalar_lea.sflag [#allocation7], 1
    %709 = vsyncpa %s708, 1
    %710 = vsyncpa [#allocation8], 1
    %s711 = scalar_lea.sflag [#allocation8], 1
    %712 = vsyncpa %s711, 1
    %713 = vsyncpa [#allocation9], 1
    %s714 = scalar_lea.sflag [#allocation9], 1
    %715 = vsyncpa %s714, 1

</llo_original>
